<compile_context>
chip_gen: v6e
topology: v6e:2x2x1
jax: 0.10.0
libtpu: 0.0.40
codegen_flags: <defaults>
</compile_context>

<pallas_src>
import functools

import jax
import jax.numpy as jnp
from jax import lax
from jax.experimental import pallas as pl
from jax.experimental.pallas import tpu as pltpu


def _offset_fidelity_kernel(offset_ref, flow_ref, out_ref, acc_ref, *,
                            threshold, scale):
    """One grid step: all c offset channels of one batch element, one lane chunk.

    offset_ref: (1, c, TN) VMEM tile, channels ordered (y1, x1, y2, x2, ...)
    flow_ref:   (1, 2, TN) VMEM tile, original (x, y) channel order
    out_ref:    (1, 1, 1)  per-batch partial loss (written on last lane chunk)
    acc_ref:    (c, TN) f32 VMEM scratch, resident across the lane-chunk axis
    """
    j = pl.program_id(1)

    @pl.when(j == 0)
    def _init():
        acc_ref[...] = jnp.zeros_like(acc_ref)

    off = offset_ref[0]                       # (c, TN), native dtype
    flw = flow_ref[0]                         # (2, TN), (x, y) order
    flow_x = flw[0:1, :]                      # (1, TN)
    flow_y = flw[1:2, :]                      # (1, TN)

    # Flip + repeat of the flow done in-register: even offset channels (y_i)
    # compare against flow_y, odd channels (x_i) against flow_x.
    parity = lax.broadcasted_iota(jnp.int32, off.shape, 0) % 2
    flow_sel = jnp.where(parity == 0, flow_y, flow_x)       # (c, TN)

    # Compute in the inputs' native dtype (bf16 stays bf16 on v6e/v7x VPUs);
    # only the running accumulator is kept in f32.
    abs_diff = jnp.abs(off - flow_sel)
    masked = jnp.where(abs_diff > threshold, abs_diff, 0.0)
    acc_ref[...] += masked.astype(jnp.float32)

    @pl.when(j == pl.num_programs(1) - 1)
    def _finalize():
        out_ref[...] = (jnp.sum(acc_ref[...]) *
                        jnp.float32(scale)).reshape(1, 1, 1)


def offset_fidelity_loss(offset, flow, loss_weight=1.0, threshold=10.0):
    n, c, h, w = offset.shape
    assert c % 2 == 0, "offset channels must be even"
    assert flow.shape == (n, 2, h, w)

    hw = h * w
    elem_bytes = jnp.dtype(offset.dtype).itemsize

    # Lane chunk: multiple of 128, sized so an offset block is ~<= 2 MiB
    # (safe under v5e's 16 MiB / v7x's 32 MiB default scoped VMEM with
    # double-buffering plus the f32 scratch accumulator).
    budget_bytes = 2 * 1024 * 1024
    tn_cap = budget_bytes // max(1, c * elem_bytes)
    tn_cap = max(512, min(2048, tn_cap))
    tn_cap = (tn_cap // 128) * 128
    if hw <= tn_cap:
        tn = ((hw + 127) // 128) * 128
    else:
        tn = tn_cap
    hw_pad = ((hw + tn - 1) // tn) * tn
    num_lane_blocks = hw_pad // tn

    offset_r = offset.reshape(n, c, hw)
    flow_r = flow.reshape(n, 2, hw)          # kept in (x, y) order; no flip copy
    if hw_pad != hw:
        pad = hw_pad - hw
        # Zero padding contributes |0 - 0| = 0 to the masked sum -> harmless.
        offset_r = jnp.pad(offset_r, ((0, 0), (0, 0), (0, pad)))
        flow_r = jnp.pad(flow_r, ((0, 0), (0, 0), (0, pad)))

    kernel = functools.partial(
        _offset_fidelity_kernel,
        threshold=float(threshold),
        # sum over pairs of mean over (2, h, w) == total_sum / (2*h*w)
        scale=float(loss_weight) / float(2 * h * w),
    )

    cost = pl.CostEstimate(
        flops=5 * n * c * hw,
        transcendentals=0,
        bytes_accessed=(n * c + 2 * n) * hw * elem_bytes + n * 4,
    )

    partials = pl.pallas_call(
        kernel,
        out_shape=jax.ShapeDtypeStruct((n, 1, 1), jnp.float32),
        grid_spec=pltpu.PrefetchScalarGridSpec(
            num_scalar_prefetch=0,
            grid=(n, num_lane_blocks),
            in_specs=[
                # all c channels of batch element b, lane chunk j
                pl.BlockSpec((1, c, tn), lambda b, j: (b, 0, j)),
                # matching flow chunk (loaded once per (b, j), reused in-reg)
                pl.BlockSpec((1, 2, tn), lambda b, j: (b, 0, j)),
            ],
            # one partial per batch element; resident across the lane axis
            out_specs=pl.BlockSpec((1, 1, 1), lambda b, j: (b, 0, 0)),
            scratch_shapes=[pltpu.VMEM((c, tn), jnp.float32)],
        ),
        compiler_params=pltpu.CompilerParams(
            dimension_semantics=("parallel", "arbitrary")),
        cost_estimate=cost,
    )(offset_r, flow_r)

    return jnp.sum(partials)


def _reference(offset, flow, loss_weight=1.0, threshold=10.0):
    """Pure-JAX transcription of the PyTorch forward."""
    n, c, h, w = offset.shape
    off = offset.reshape(-1, 2, h, w)
    flw = jnp.tile(flow[:, ::-1, :, :], (1, c // 2, 1, 1)).reshape(-1, 2, h, w)
    abs_diff = jnp.abs(off - flw)
    mask = (abs_diff > threshold).astype(abs_diff.dtype)
    return loss_weight * jnp.sum(jnp.mean(mask * abs_diff, axis=(1, 2, 3)))


if __name__ == "__main__":
    # Small deterministic example: n=2, c=8 (4 offset pairs), h=w=16.
    key = jax.random.PRNGKey(0)
    k_off, k_flow = jax.random.split(key)
    n, c, h, w = 2, 8, 16, 16
    # Scale so a mix of values falls above / below the threshold (t=10).
    offset = jax.random.normal(k_off, (n, c, h, w), dtype=jnp.float32) * 20.0
    flow = jax.random.normal(k_flow, (n, 2, h, w), dtype=jnp.float32) * 5.0

    loss_weight, threshold = 1.0, 10.0

    out = offset_fidelity_loss(offset, flow, loss_weight, threshold)
    out = jax.block_until_ready(out)

    ref = _reference(offset, flow, loss_weight, threshold)
    ref = jax.block_until_ready(ref)

    assert jnp.allclose(out, ref, rtol=1e-5, atol=1e-4), (out, ref)
    print("KERNEL_OK")
</pallas_src>

<mosaic_0001>
module attributes {stable_mosaic.version = 11 : i64} {
  func.func @_offset_fidelity_kernel(%arg0: i32, %arg1: i32, %arg2: memref<1x8x256xf32, #tpu.memory_space<vmem>>, %arg3: memref<1x2x256xf32, #tpu.memory_space<vmem>>, %arg4: memref<1x1x1xf32, #tpu.memory_space<vmem>>, %arg5: memref<8x256xf32, #tpu.memory_space<vmem>>) attributes {dimension_semantics = [#tpu.dimension_semantics<parallel>, #tpu.dimension_semantics<arbitrary>], iteration_bounds = array<i64: 2, 1>, scalar_prefetch = 0 : i64, scratch_operands = 1 : i64, tpu.core_type = #tpu.core_type<tc>, window_params = [{transform_indices = @transform_0, window_bounds = array<i64: 1, 8, 256>}, {transform_indices = @transform_1, window_bounds = array<i64: 1, 2, 256>}, {transform_indices = @transform_2, window_bounds = array<i64: 1, 1, 1>}]} {
    %c0_i32 = arith.constant 0 : i32
    %0 = arith.cmpi eq, %arg1, %c0_i32 : i32
    %1 = arith.extui %0 : i1 to i32
    %c0_i32_0 = arith.constant 0 : i32
    %2 = arith.cmpi ne, %1, %c0_i32_0 : i32
    scf.if %2 {
      %cst_18 = arith.constant 0.000000e+00 : f32
      %45 = vector.broadcast %cst_18 : f32 to vector<8x256xf32>
      %c0_19 = arith.constant 0 : index
      %c0_20 = arith.constant 0 : index
      %46 = vector.load %arg5[%c0_19, %c0_20] : memref<8x256xf32, #tpu.memory_space<vmem>>, vector<8x256xf32>
      tpu.vector_store %arg5[%c0_19, %c0_20], %45 {strides = array<i32>} : memref<8x256xf32, #tpu.memory_space<vmem>>, vector<8x256xf32>,
    } else {
    }
    %c0 = arith.constant 0 : index
    %c0_1 = arith.constant 0 : index
    %c0_2 = arith.constant 0 : index
    %3 = vector.load %arg2[%c0, %c0_1, %c0_2] : memref<1x8x256xf32, #tpu.memory_space<vmem>>, vector<1x8x256xf32>
    %4 = vector.shape_cast %3 : vector<1x8x256xf32> to vector<8x256xf32>
    %c0_3 = arith.constant 0 : index
    %c0_4 = arith.constant 0 : index
    %c0_5 = arith.constant 0 : index
    %5 = vector.load %arg3[%c0_3, %c0_4, %c0_5] : memref<1x2x256xf32, #tpu.memory_space<vmem>>, vector<1x2x256xf32>
    %6 = vector.shape_cast %5 : vector<1x2x256xf32> to vector<2x256xf32>
    %7 = vector.extract_strided_slice %6 {offsets = [0, 0], sizes = [1, 256], strides = [1, 1]} : vector<2x256xf32> to vector<1x256xf32>
    %8 = vector.extract_strided_slice %6 {offsets = [1, 0], sizes = [1, 256], strides = [1, 1]} : vector<2x256xf32> to vector<1x256xf32>
    %9 = tpu.iota {dimensions = array<i32: 0>} : vector<8x256xi32>
    %c2_i32 = arith.constant 2 : i32
    %c0_i32_6 = arith.constant 0 : i32
    %10 = arith.cmpi eq, %c2_i32, %c0_i32_6 : i32
    %c1_i32 = arith.constant 1 : i32
    %11 = arith.select %10, %c1_i32, %c2_i32 : i32
    %12 = vector.broadcast %11 : i32 to vector<8x256xi32>
    %13 = arith.remsi %9, %12 : vector<8x256xi32>
    %c0_i32_7 = arith.constant 0 : i32
    %14 = vector.broadcast %c0_i32_7 : i32 to vector<8x256xi32>
    %15 = arith.cmpi ne, %13, %14 : vector<8x256xi32>
    %c0_i32_8 = arith.constant 0 : i32
    %16 = vector.broadcast %c0_i32_8 : i32 to vector<8x256xi32>
    %17 = arith.cmpi slt, %13, %16 : vector<8x256xi32>
    %c0_i32_9 = arith.constant 0 : i32
    %18 = arith.cmpi slt, %11, %c0_i32_9 : i32
    %19 = vector.broadcast %18 : i1 to vector<8x256xi1>
    %20 = vector.broadcast %19 : vector<8x256xi1> to vector<8x256xi1>
    %21 = arith.xori %17, %20 : vector<8x256xi1>
    %22 = arith.andi %21, %15 : vector<8x256xi1>
    %23 = vector.broadcast %11 : i32 to vector<8x256xi32>
    %24 = arith.addi %13, %23 : vector<8x256xi32>
    %25 = arith.select %22, %24, %13 : vector<8x256xi1>, vector<8x256xi32>
    %c0_i32_10 = arith.constant 0 : i32
    %26 = vector.broadcast %c0_i32_10 : i32 to vector<8x256xi32>
    %27 = arith.cmpi eq, %25, %26 : vector<8x256xi32>
    %28 = vector.shape_cast %8 : vector<1x256xf32> to vector<1x256xf32>
    %29 = vector.broadcast %28 : vector<1x256xf32> to vector<8x256xf32>
    %30 = vector.shape_cast %7 : vector<1x256xf32> to vector<1x256xf32>
    %31 = vector.broadcast %30 : vector<1x256xf32> to vector<8x256xf32>
    %32 = arith.select %27, %29, %31 : vector<8x256xi1>, vector<8x256xf32>
    %33 = arith.subf %4, %32 : vector<8x256xf32>
    %34 = math.absf %33 : vector<8x256xf32>
    %cst = arith.constant 1.000000e+01 : f32
    %35 = vector.broadcast %cst : f32 to vector<8x256xf32>
    %36 = arith.cmpf ogt, %34, %35 : vector<8x256xf32>
    %cst_11 = arith.constant 0.000000e+00 : f32
    %37 = vector.broadcast %cst_11 : f32 to vector<8x256xf32>
    %38 = arith.select %36, %34, %37 : vector<8x256xi1>, vector<8x256xf32>
    %c0_12 = arith.constant 0 : index
    %c0_13 = arith.constant 0 : index
    %39 = vector.load %arg5[%c0_12, %c0_13] : memref<8x256xf32, #tpu.memory_space<vmem>>, vector<8x256xf32>
    %40 = arith.addf %39, %38 : vector<8x256xf32>
    %c0_14 = arith.constant 0 : index
    %c0_15 = arith.constant 0 : index
    %41 = vector.load %arg5[%c0_14, %c0_15] : memref<8x256xf32, #tpu.memory_space<vmem>>, vector<8x256xf32>
    tpu.vector_store %arg5[%c0_14, %c0_15], %40 {strides = array<i32>} : memref<8x256xf32, #tpu.memory_space<vmem>>, vector<8x256xf32>,
    %c0_i32_16 = arith.constant 0 : i32
    %42 = arith.cmpi eq, %arg1, %c0_i32_16 : i32
    %43 = arith.extui %42 : i1 to i32
    %c0_i32_17 = arith.constant 0 : i32
    %44 = arith.cmpi ne, %43, %c0_i32_17 : i32
    scf.if %44 {
      %c0_18 = arith.constant 0 : index
      %c0_19 = arith.constant 0 : index
      %45 = vector.load %arg5[%c0_18, %c0_19] : memref<8x256xf32, #tpu.memory_space<vmem>>, vector<8x256xf32>
      %46 = vector.shape_cast %45 : vector<8x256xf32> to vector<1x8x256xf32>
      %cst_20 = arith.constant dense<0.000000e+00> : vector<1xf32>
      %47 = vector.multi_reduction <add>, %46, %cst_20 [1, 2] : vector<1x8x256xf32> to vector<1xf32>
      %48 = vector.shape_cast %47 : vector<1xf32> to vector<1x1x1xf32>
      %49 = vector.extract %48[0, 0, 0] : f32 from vector<1x1x1xf32>
      %cst_21 = arith.constant 0.001953125 : f32
      %50 = arith.mulf %49, %cst_21 : f32
      %51 = vector.broadcast %50 : f32 to vector<1x1x1xf32>
      %c0_22 = arith.constant 0 : index
      %c0_23 = arith.constant 0 : index
      %c0_24 = arith.constant 0 : index
      %52 = vector.load %arg4[%c0_22, %c0_23, %c0_24] : memref<1x1x1xf32, #tpu.memory_space<vmem>>, vector<1x1x1xf32>
      tpu.vector_store %arg4[%c0_22, %c0_23, %c0_24], %51 {strides = array<i32>} : memref<1x1x1xf32, #tpu.memory_space<vmem>>, vector<1x1x1xf32>,
    } else {
    }
    return
  }
  func.func @transform_0(%arg0: i32, %arg1: i32) -> (i32, i32, i32) {
    %c0_i32 = arith.constant 0 : i32
    %c0_i32_0 = arith.constant 0 : i32
    return %arg0, %c0_i32, %arg1 : i32, i32, i32
  }
  func.func @transform_1(%arg0: i32, %arg1: i32) -> (i32, i32, i32) {
    %c0_i32 = arith.constant 0 : i32
    %c0_i32_0 = arith.constant 0 : i32
    return %arg0, %c0_i32, %arg1 : i32, i32, i32
  }
  func.func @transform_2(%arg0: i32, %arg1: i32) -> (i32, i32, i32) {
    %c0_i32 = arith.constant 0 : i32
    %c0_i32_0 = arith.constant 0 : i32
    %c0_i32_1 = arith.constant 0 : i32
    return %arg0, %c0_i32, %c0_i32_0 : i32, i32, i32
  }
}

</mosaic_0001>

<llo_original>
// kernel: tpu_custom_call.1
$region0: #{tpu_custom_call.1}
  #allocation0 [shape = 'u32[]', space=smem, size = 0x4, offset = 0x4, fixed_abs, tag = 'smem constant byte address 0x4 - core index']
  #allocation1 [shape = 'u32[144,128]{1,0:T(1,128)}', space=vmem, size = 0x12000, scoped, tag = 'internal scratch']
  #allocation2 [shape = 'f32[8,256]{1,0:T(8,128)}', space=vmem, size = 0x2000, scoped, tag = 'scratch operand']
  %s0 = inlined_call_operand.hbm [shape: f32[2,8,256], index: 0, kind: input, shape index: {}]
  %s1 = inlined_call_operand.hbm [shape: f32[2,2,256], index: 1, kind: input, shape index: {}]
  %s2 = inlined_call_operand.vmem [shape: f32[2,1,1], index: 2, kind: output, shape index: {}]
  %s3 = sld [smem:[#allocation0]]
  $region57: #{tpu_custom_call.1} parent=0
    _
  %s5 = ssub.s32 1, %s3
  %s6 = scalar_select 0, %s5, %s3
  $region1: #{tpu_custom_call.1} parent=0
    #allocation3 [shape = 'u8[16384]{0}', space=vmem, size = 0x4000, scoped, tag = 'input window, operand 0']
    #allocation4 [shape = 's32[2]{0}', space=sflag, size = 0x8, scoped, tag = 'scoped memory for tpu_custom_call.1']
    #allocation5 [shape = 'u8[4096]{0}', space=vmem, size = 0x1000, scoped, tag = 'input window, operand 1']
    #allocation6 [shape = 's32[2]{0}', space=sflag, size = 0x8, scoped, tag = 'scoped memory for tpu_custom_call.1']
    %7 = vsyncpa [#allocation4], 0
    %s8 = scalar_lea.sflag [#allocation4], 1
    %9 = vsyncpa %s8, 0
    %10 = vsyncpa [#allocation6], 0
    %s11 = scalar_lea.sflag [#allocation6], 1
    %12 = vsyncpa %s11, 0
    loop: start=0, step=1, limit=4
    $region2: #{tpu_custom_call.1} parent=1 // loop_pre_header
      _
    $region3: #{tpu_custom_call.1} parent=1 // loop_header
      %s14 = sphi 0, %s18
      %p15 = scmp.ge.s32.totalorder %s14, 4
      %s21 = sphi 0, %s33
      %s22 = sphi 0, %s29
      %s23 = sphi 0, %s21
      %s24 = sphi 0, %s22
      %s25 = sphi 0, %s23
      %s26 = sphi 0, %s24
      %s38 = sphi 0, %s40
      %s41 = sphi 0, %s38
      %s42 = sphi 0, %s41
      %s58 = sphi 0, %s42
      %s66 = sphi 0, %s68
      %s69 = sphi 0, %s66
      %s70 = sphi 0, %s69
      %s86 = sphi 0, %s70
      %s92 = sphi 0, %s94
      %s95 = sphi 0, %s92
      %s96 = sphi 0, %s95
      %s112 = sphi 0, %s96
    $region4: #{tpu_custom_call.1} parent=1 // loop_header_branch
      %17 = sbr.rel (%p15) target = $region8
    $region5: #{tpu_custom_call.1} parent=1 // loop_body
      %s19 = ssub.s32 %s14, 1
      %s20 = ssub.s32 %s14, 2
      %s27 = sadd.s32 1, %s22
      %p28 = scmp.ge.s32.totalorder %s27, 1
      %s29 = scalar_select %p28, 0, %s27
      %s30 = sadd.s32 1, %s21
      %s31 = scalar_select %p28, %s30, %s21
      %p32 = scmp.ge.s32.totalorder %s31, 2
      %s33 = scalar_select %p32, 0, %s31
      %s34 = ssub.s32 %s21, %s33
      %s35 = ssub.s32 %s22, %s29
      %s36 = sor.u32 %s34, %s35
      %p37 = scmp.eq.s32.totalorder %s36, 0
      %s39 = sadd.s32 %s38, 1
      %s40 = scalar_select %p37, %s38, %s39
      %p43 = pneg %p37
      %p44 = scmp.eq.s32.totalorder %s14, 1
      %p45 = por %p43, %p44
      %p46 = scmp.ne.s32.totalorder %s38, %s41
      %p47 = scmp.eq.s32.totalorder %s14, 0
      %p48 = por %p46, %p47
      %p49 = scmp.ne.s32.totalorder %s38, %s41
      %p50 = scmp.eq.s32.totalorder %s19, 1
      %p51 = por %p49, %p50
      %p52 = scmp.ne.s32.totalorder %s41, %s42
      %p53 = scmp.eq.s32.totalorder %s19, 0
      %p54 = por %p52, %p53
      %p55 = scmp.ne.s32.totalorder %s41, %s42
      %p56 = scmp.eq.s32.totalorder %s20, 1
      %p57 = por %p55, %p56
      %p59 = scmp.ne.s32.totalorder %s42, %s58
      %p60 = scmp.eq.s32.totalorder %s20, 0
      %p61 = por %p59, %p60
      %s62 = ssub.s32 %s21, %s33
      %s63 = ssub.s32 %s22, %s29
      %s64 = sor.u32 %s62, %s63
      %p65 = scmp.eq.s32.totalorder %s64, 0
      %s67 = sadd.s32 %s66, 1
      %s68 = scalar_select %p65, %s66, %s67
      %p71 = pneg %p65
      %p72 = scmp.eq.s32.totalorder %s14, 1
      %p73 = por %p71, %p72
      %p74 = scmp.ne.s32.totalorder %s66, %s69
      %p75 = scmp.eq.s32.totalorder %s14, 0
      %p76 = por %p74, %p75
      %p77 = scmp.ne.s32.totalorder %s66, %s69
      %p78 = scmp.eq.s32.totalorder %s19, 1
      %p79 = por %p77, %p78
      %p80 = scmp.ne.s32.totalorder %s69, %s70
      %p81 = scmp.eq.s32.totalorder %s19, 0
      %p82 = por %p80, %p81
      %p83 = scmp.ne.s32.totalorder %s69, %s70
      %p84 = scmp.eq.s32.totalorder %s20, 1
      %p85 = por %p83, %p84
      %p87 = scmp.ne.s32.totalorder %s70, %s86
      %p88 = scmp.eq.s32.totalorder %s20, 0
      %p89 = por %p87, %p88
      %s90 = ssub.s32 %s21, %s33
      %p91 = scmp.eq.s32.totalorder %s90, 0
      %s93 = sadd.s32 %s92, 1
      %s94 = scalar_select %p91, %s92, %s93
      %p97 = pneg %p91
      %p98 = scmp.eq.s32.totalorder %s14, 1
      %p99 = por %p97, %p98
      %p100 = scmp.ne.s32.totalorder %s92, %s95
      %p101 = scmp.eq.s32.totalorder %s14, 0
      %p102 = por %p100, %p101
      %p103 = scmp.ne.s32.totalorder %s92, %s95
      %p104 = scmp.eq.s32.totalorder %s19, 1
      %p105 = por %p103, %p104
      %p106 = scmp.ne.s32.totalorder %s95, %s96
      %p107 = scmp.eq.s32.totalorder %s19, 0
      %p108 = por %p106, %p107
      %p109 = scmp.ne.s32.totalorder %s95, %s96
      %p110 = scmp.eq.s32.totalorder %s20, 1
      %p111 = por %p109, %p110
      %p113 = scmp.ne.s32.totalorder %s96, %s112
      %p114 = scmp.eq.s32.totalorder %s20, 0
      %p115 = por %p113, %p114
      %p116 = scmp.le.s32.totalorder 1, %s14
      %p117 = scmp.lt.s32.totalorder %s14, 3
      %p118 = pnand %p116, %p117
      %p119 = pneg %p118
      // Predicated region
      $region9: #{tpu_custom_call.1} parent=5 // pred_check
        _
      $region10: #{tpu_custom_call.1} parent=5 // pred_check_branch
        %121 = sbr.rel (%p118) target = $region12
      $region11: #{tpu_custom_call.1} parent=5 // pred_region
        %s122 = ssub.s32 %s14, 1
      $region12: #{tpu_custom_call.1} parent=5 // pred_fallthru
        _
      %p123 = scmp.lt.s32.totalorder %s14, 2
      // Predicated region
      $region13: #{tpu_custom_call.1} parent=5 // pred_check
        %p124 = pneg %p123
      $region14: #{tpu_custom_call.1} parent=5 // pred_check_branch
        %126 = sbr.rel (%p124) target = $region16
      $region15: #{tpu_custom_call.1} parent=5 // pred_region
        // Predicated region
        $region17: #{tpu_custom_call.1} parent=15 // pred_check
          %p127 = pneg %p48
        $region18: #{tpu_custom_call.1} parent=15 // pred_check_branch
          %129 = sbr.rel (%p127) target = $region20
        $region19: #{tpu_custom_call.1} parent=15 // pred_region
          %s130 = sand.u32 %s38, 1
          %s131 = scalar_lea.sflag [#allocation4], %s130
          %s132 = sand.u32 %s38, 1
          %s133 = smul.addr %s132, 16
          %s134 = scalar_lea.vmem [#allocation3], %s133
          %s135 = smul.u32 2, %s22
          %s137 = ssub.s32 256, 256
          %138 = vsyncadd %s131, %s137
          %s139 = smul.addr %s21, 2
          %s140 = sadd.s32 %s135, %s139
          %s141 = smul.addr %s140, 128
          %s142 = scalar_lea.hbm %s0, %s141
          %s144 = sshll.u32 %s134, 4
          %s145 = int_to_ptr.vmem [resolvable:$true] %s144
          %147 = dma.hbm_to_vmem [thread:$0]  %s142, 256, %s145, %s131
        $region20: #{tpu_custom_call.1} parent=15 // pred_fallthru
          _
        // Predicated region
        $region21: #{tpu_custom_call.1} parent=15 // pred_check
          %p148 = pneg %p76
        $region22: #{tpu_custom_call.1} parent=15 // pred_check_branch
          %150 = sbr.rel (%p148) target = $region24
        $region23: #{tpu_custom_call.1} parent=15 // pred_region
          %s151 = sand.u32 %s66, 1
          %s152 = scalar_lea.sflag [#allocation6], %s151
          %s153 = sand.u32 %s66, 1
          %s154 = smul.addr %s153, 4
          %s155 = scalar_lea.vmem [#allocation5], %s154
          %s156 = smul.u32 2, %s22
          %s158 = ssub.s32 64, 64
          %159 = vsyncadd %s152, %s158
          %s160 = smul.addr %s21, 2
          %s161 = sadd.s32 %s156, %s160
          %s162 = smul.addr %s161, 32
          %s163 = scalar_lea.hbm %s1, %s162
          %s165 = sshll.u32 %s155, 4
          %s166 = int_to_ptr.vmem [resolvable:$true] %s165
          %168 = dma.hbm_to_vmem [thread:$0]  %s163, 64, %s166, %s152
        $region24: #{tpu_custom_call.1} parent=15 // pred_fallthru
          _
      $region16: #{tpu_custom_call.1} parent=5 // pred_fallthru
        _
      %p169 = scmp.le.s32.totalorder 1, %s14
      %p170 = scmp.lt.s32.totalorder %s14, 3
      %p171 = pnand %p169, %p170
      %p172 = pneg %p171
      // Predicated region
      $region25: #{tpu_custom_call.1} parent=5 // pred_check
        _
      $region26: #{tpu_custom_call.1} parent=5 // pred_check_branch
        %174 = sbr.rel (%p171) target = $region28
      $region27: #{tpu_custom_call.1} parent=5 // pred_region
        %s175 = ssub.s32 %s14, 1
        %s176 = sand.u32 %s41, 1
        %s177 = scalar_lea.sflag [#allocation4], %s176
        %s178 = sand.u32 %s41, 1
        %s179 = smul.addr %s178, 16
        %s180 = scalar_lea.vmem [#allocation3], %s179
        // Predicated region
        $region29: #{tpu_custom_call.1} parent=27 // pred_check
          %p181 = pneg %p54
        $region30: #{tpu_custom_call.1} parent=27 // pred_check_branch
          %183 = sbr.rel (%p181) target = $region32
        $region31: #{tpu_custom_call.1} parent=27 // pred_region
          %184 = dma.done %s177, 256
        $region32: #{tpu_custom_call.1} parent=27 // pred_fallthru
          _
        %s185 = sand.u32 %s69, 1
        %s186 = scalar_lea.sflag [#allocation6], %s185
        %s187 = sand.u32 %s69, 1
        %s188 = smul.addr %s187, 4
        %s189 = scalar_lea.vmem [#allocation5], %s188
        // Predicated region
        $region33: #{tpu_custom_call.1} parent=27 // pred_check
          %p190 = pneg %p82
        $region34: #{tpu_custom_call.1} parent=27 // pred_check_branch
          %192 = sbr.rel (%p190) target = $region36
        $region35: #{tpu_custom_call.1} parent=27 // pred_region
          %193 = dma.done %s186, 64
        $region36: #{tpu_custom_call.1} parent=27 // pred_fallthru
          _
        %s194 = sand.u32 %s41, 1
        %s195 = scalar_lea.sflag [#allocation4], %s194
        %s196 = sand.u32 %s41, 1
        %s197 = smul.addr %s196, 16
        %s198 = scalar_lea.vmem [#allocation3], %s197
        %p199 = pneg %p54
        %p200 = pneg %p51
        %s201 = sand.u32 %s69, 1
        %s202 = scalar_lea.sflag [#allocation6], %s201
        %s203 = sand.u32 %s69, 1
        %s204 = smul.addr %s203, 4
        %s205 = scalar_lea.vmem [#allocation5], %s204
        %p206 = pneg %p82
        %p207 = pneg %p79
        %p208 = pneg %p108
        %p209 = pneg %p105
        %p210 = scmp.lt.s32.totalorder %s23, 1
        %s211 = scalar_select %p210, %s23, 1
        %s212 = scalar_lea.vmem %s2, %s211
        %s213 = smul.u32 2, %s24
        %s214 = smul.u32 2, %s24
        %p215 = scmp.lt.s32.totalorder %s23, 1
        %s216 = scalar_select %p215, %s23, 1
        %s217 = scalar_lea.vmem %s2, %s216
        %p218 = scmp.eq.s32.totalorder %s24, 0
        // Predicated region
        $region37: #{tpu_custom_call.1} parent=27 // pred_check
          %p219 = pneg %p218
        $region38: #{tpu_custom_call.1} parent=27 // pred_check_branch
          %221 = sbr.rel (%p219) target = $region40
        $region39: #{tpu_custom_call.1} parent=27 // pred_region
          %222 = vst [vmem:[#allocation2] sm:$0xff] 0.0
          %223 = vst [vmem:[#allocation2 + $0x8] sm:$0xff] 0.0
        $region40: #{tpu_custom_call.1} parent=27 // pred_fallthru
          _
        %v224 = vld [vmem:[%s180] sm:$0xff]
        %v225 = vld [vmem:[%s180 + $0x8] sm:$0xff]
        %v226 = vld [vmem:[%s189] sm:$0xf]
        %v227 = vlaneseq
        %v228 = vshrl.u32 %v227, 7
        %vm229 = vcmp.lt.s32.totalorder %v228, 0
        %v230 = vsub.s32 0, %v228
        %v231 = vsel %vm229, %v230, %v228
        %v232 = vshrl.u32 %v231, 1
        %v233 = vand.u32 %v231, 1
        %v234 = vsub.s32 0, %v233
        %v235 = vsel %vm229, %v234, %v233
        %vm236 = vcmp.ne.s32.totalorder %v235, 0
        %vm237 = vcmp.lt.s32.totalorder %v235, 0
        %vm238 = vmand %vm237, %vm236
        %v239 = vadd.s32 %v235, 2
        %v240 = vsel %vm238, %v239, %v235
        %vm241 = vcmp.eq.s32.totalorder %v240, 0
        %v243 = vlaneseq
        %v244 = vshrl.u32 %v243, 7
        %v245 = vsub.s32 1, %v244
        %v246 = vrot.slane %v226, %v245
        %v247 = vlaneseq
        %v248 = vshrl.u32 %v247, 7
        %v249 = vsub.s32 3, %v248
        %v250 = vrot.slane %v226, %v249
        %v253 = vlaneseq
        %v254 = vshrl.u32 %v253, 7
        %v255 = vsub.s32 1, %v254
        %v256 = vrot.slane %v246, %v255
        %v257 = vlaneseq
        %v258 = vshrl.u32 %v257, 7
        %v259 = vsub.s32 1, %v258
        %v260 = vrot.slane %v250, %v259
        %v261 = vlaneseq
        %v262 = vshrl.u32 %v261, 7
        %v263 = vsub.s32 0, %v262
        %v264 = vrot.slane %v226, %v263
        %v265 = vlaneseq
        %v266 = vshrl.u32 %v265, 7
        %v267 = vsub.s32 2, %v266
        %v268 = vrot.slane %v226, %v267
        %v271 = vlaneseq
        %v272 = vshrl.u32 %v271, 7
        %v273 = vsub.s32 0, %v272
        %v274 = vrot.slane %v264, %v273
        %v275 = vlaneseq
        %v276 = vshrl.u32 %v275, 7
        %v277 = vsub.s32 0, %v276
        %v278 = vrot.slane %v268, %v277
        %v279 = vsel %vm241, %v256, %v274
        %v280 = vsel %vm241, %v260, %v278
        %v281 = vsub.f32 %v224, %v279
        %v282 = vsub.f32 %v225, %v280
        %v283 = vand.u32 2147483647, %v281
        %v284 = vand.u32 2147483647, %v282
        %vm285 = vcmp.gt.f32.partialorder %v283, 10.0
        %vm286 = vcmp.gt.f32.partialorder %v284, 10.0
        %v287 = vsel %vm285, %v283, 0.0
        %v288 = vsel %vm286, %v284, 0.0
        %v289 = vld [vmem:[#allocation2] sm:$0xff]
        %v290 = vld [vmem:[#allocation2 + $0x8] sm:$0xff]
        %v291 = vadd.f32 %v289, %v287
        %v292 = vadd.f32 %v290, %v288
        %293 = vst [vmem:[#allocation2] sm:$0xff] %v291
        %294 = vst [vmem:[#allocation2 + $0x8] sm:$0xff] %v292
        // Predicated region
        $region41: #{tpu_custom_call.1} parent=27 // pred_check
          %p295 = pneg %p218
        $region42: #{tpu_custom_call.1} parent=27 // pred_check_branch
          %297 = sbr.rel (%p295) target = $region44
        $region43: #{tpu_custom_call.1} parent=27 // pred_region
          %v298 = vld [vmem:[#allocation2] sm:$0xff]
          %v299 = vld [vmem:[#allocation2 + $0x8] sm:$0xff]
          %v300 = vadd.f32 %v298, %v299
          %301 = vadd.xlane.f32.xlu0 %v300
          %v302 = vpop.xlane.xlu0 %301
          %v303 = vrot.slane %v302, 4
          %v304 = vadd.f32 %v302, %v303
          %v305 = vrot.slane %v304, 2
          %v306 = vadd.f32 %v304, %v305
          %v307 = vrot.slane %v306, 1
          %v308 = vadd.f32 %v306, %v307
          %s309 = vtos %v308
          %s310 = smul.f32 %s309, 0.001953125
          %v311 = vstv %s310
          %vm312 = vcmask 0
          %313 = vst.msk [vmem:[%s217] sm:$0x1] %vm312, %v311
        $region44: #{tpu_custom_call.1} parent=27 // pred_fallthru
          _
        %p314 = scmp.lt.s32.totalorder %s23, 1
        %s315 = scalar_select %p314, %s23, 1
        %s316 = scalar_lea.vmem %s2, %s315
        // Predicated region
        $region45: #{tpu_custom_call.1} parent=27 // pred_check
          %p317 = pneg %p105
        $region46: #{tpu_custom_call.1} parent=27 // pred_check_branch
          %319 = sbr.rel (%p317) target = $region48
        $region47: #{tpu_custom_call.1} parent=27 // pred_region
          _
        $region48: #{tpu_custom_call.1} parent=27 // pred_fallthru
          _
      $region28: #{tpu_custom_call.1} parent=5 // pred_fallthru
        _
      %p320 = scmp.le.s32.totalorder 2, %s14
      // Predicated region
      $region49: #{tpu_custom_call.1} parent=5 // pred_check
        %p321 = pneg %p320
      $region50: #{tpu_custom_call.1} parent=5 // pred_check_branch
        %323 = sbr.rel (%p321) target = $region52
      $region51: #{tpu_custom_call.1} parent=5 // pred_region
        %s324 = ssub.s32 %s14, 2
        // Predicated region
        $region53: #{tpu_custom_call.1} parent=51 // pred_check
          %p325 = pneg %p111
        $region54: #{tpu_custom_call.1} parent=51 // pred_check_branch
          %327 = sbr.rel (%p325) target = $region56
        $region55: #{tpu_custom_call.1} parent=51 // pred_region
          %p328 = scmp.lt.s32.totalorder %s25, 1
          %s329 = scalar_select %p328, %s25, 1
          %s330 = scalar_lea.vmem %s2, %s329
        $region56: #{tpu_custom_call.1} parent=51 // pred_fallthru
          _
      $region52: #{tpu_custom_call.1} parent=5 // pred_fallthru
        _
    $region6: #{tpu_custom_call.1} parent=1 // loop_footer
      %s18 = sadd.s32 1, %s14
    $region7: #{tpu_custom_call.1} parent=1 // loop_footer_branch
      %13 = sbr.rel target = $region3
    $region8: #{tpu_custom_call.1} parent=1 // loop_exit
      _
    %331 = vsyncpa [#allocation4], 1
    %s332 = scalar_lea.sflag [#allocation4], 1
    %333 = vsyncpa %s332, 1
    %334 = vsyncpa [#allocation6], 1
    %s335 = scalar_lea.sflag [#allocation6], 1
    %336 = vsyncpa %s335, 1

</llo_original>
